<compile_context>
chip_gen: v7x
topology: tpu7x:2x2x1
jax: 0.10.0
libtpu: 0.0.40
codegen_flags: <defaults>
</compile_context>

<pallas_src>
import numpy as np
import jax
import jax.numpy as jnp
from jax import lax
from jax.experimental import pallas as pl
from jax.experimental.pallas import tpu as pltpu  # noqa: F401  (TPU backend)

# ---- model hyperparameters (small, consistent with the module) ----
B = 2            # batch (sz_b)
LQ = 8           # len_q
LK = 8           # len_k == len_v
H = 4            # n_head
DM = 32          # d_model
DK = 8           # d_k
DV = 8           # d_v
BL = B * LQ      # 16
HL = H * LQ      # 32
R = B * H * LQ   # 64 rows in the flattened (b, h, i) layout

NEG = -10000000000.0   # masked_fill value used by the module
EPS = 1e-5             # nn.LayerNorm default eps
SLOPE = 0.2            # LeakyReLU negative slope


def map_mha_kernel(a_ref, w_ref, o_ref):
    f32 = jnp.float32

    # ---- packed parameters (one lane-dense slab -> one DMA) ----
    lhs_w = w_ref[0:R, 0:64]             # (64,64) = [m_q_rep | m_k_rep]
    blk   = w_ref[0:R, 64:96]            # (64,32) block-diagonal head select
    wv_t  = w_ref[0:DM, 96:128]          # (32,32) wv.weight.T
    fc_t  = w_ref[DM:2 * DM, 96:128]     # (32,32) fc.weight.T
    fc_b  = w_ref[2 * DM:2 * DM + 1, 0:32]
    gamma = w_ref[2 * DM + 1:2 * DM + 2, 0:32]
    beta  = w_ref[2 * DM + 2:2 * DM + 3, 0:32]

    # ---- packed activations (one lane-dense slab -> one DMA) ----
    lhs_a = a_ref[0:R, 0:64]             # (64,64) = [q replicated per (b,h) | ones]
    rhs   = a_ref[0:R, 64:80]            # (64,16) = [ones(32,16) ; k^T]
    bias  = a_ref[0:R, 80:96]            # (64,16) additive mask bias (0 / -1e10)
    v2d   = a_ref[0:BL, 96:128]          # (16,32)
    q2d   = a_ref[BL:2 * BL, 96:128]     # (16,32) residual

    # V projection (one MXU push)
    vp = jnp.dot(v2d, wv_t, preferred_element_type=f32)                  # (16,32)

    # Additive attention scores for every (b,h,i) x (b',j) pair: one MXU push.
    #   (lhs_w*lhs_a) = [Wql[:,h]*q_{b,i} | Wkl[:,h]] ,  rhs = [1 ; k^T]
    #   -> s[r,c] = q_{b,i}.Wql[:,h] + k_{b',j}.Wkl[:,h]
    s = jnp.dot(lhs_w * lhs_a, rhs, preferred_element_type=f32) + bias   # (64,16)
    s = s - jnp.max(s, axis=-1, keepdims=True)
    e = jnp.exp(s)
    p = e / jnp.sum(e, axis=-1, keepdims=True)   # exact softmax (matches reference)
    # cross-batch / masked entries are exactly 0 after the -1e10 bias.

    # attn @ V for all batches & heads with ONE (64,16)x(16,32) MXU push.
    big = jnp.dot(p, vp, preferred_element_type=f32) * blk               # (64,32)
    o0 = big[0:8] + big[8:16] + big[16:24] + big[24:32]                  # batch 0
    o1 = big[32:40] + big[40:48] + big[48:56] + big[56:64]               # batch 1
    o_attn = jnp.concatenate([o0, o1], axis=0)                           # (16,32)

    # fc -> LeakyReLU(0.2) -> (dropout = identity) -> residual -> LayerNorm
    y = jnp.dot(o_attn, fc_t, preferred_element_type=f32) + fc_b
    y = jnp.where(y > 0.0, y, SLOPE * y)
    z = y + q2d
    mu = jnp.mean(z, axis=-1, keepdims=True)
    var = jnp.mean((z - mu) * (z - mu), axis=-1, keepdims=True)
    outn = (z - mu) * lax.rsqrt(var + EPS) * gamma + beta                # (16,32)

    # ---- pack both outputs into ONE lane-dense (16,128) slab (single DMA) ----
    o_ref[:, 0:32] = outn
    o_ref[:, 32:48] = p[0:16, :]
    o_ref[:, 48:64] = p[16:32, :]
    o_ref[:, 64:80] = p[32:48, :]
    o_ref[:, 80:96] = p[48:64, :]
    o_ref[:, 96:128] = jnp.zeros((BL, 32), f32)   # deterministic padding


def pack_params(params):
    """Parameter-only packing. Run ONCE, outside the per-call jit path."""
    f32 = jnp.float32
    wq = params["wq"].astype(f32)
    wk = params["wk"].astype(f32)
    wv = params["wv"].astype(f32)
    w_map = params["w_map"].astype(f32)
    fc_w = params["fc_w"].astype(f32)
    fc_b = params["fc_b"].astype(f32)
    ln_g = params["ln_g"].astype(f32)
    ln_b = params["ln_b"].astype(f32)

    # Fold weight_map into the q / k projections (exact algebra):
    #   score(b,h,i,j) = q_i . Wql[:, h] + k_j . Wkl[:, h]
    wmap_q = w_map[0, :DK]
    wmap_k = w_map[0, DK:]
    wql = jnp.einsum("hdm,d->mh", wq.reshape(H, DK, DM), wmap_q)    # (DM, H)
    wkl = jnp.einsum("hdm,d->mh", wk.reshape(H, DK, DM), wmap_k)    # (DM, H)
    m_q_rep = jnp.tile(jnp.repeat(wql.T, LQ, axis=0), (B, 1))       # (64, 32)
    m_k_rep = jnp.tile(jnp.repeat(wkl.T, LQ, axis=0), (B, 1))       # (64, 32)

    rr = np.arange(R)[:, None]
    cc = np.arange(DM)[None, :]
    blk = jnp.asarray(((rr // LQ) % H) == (cc // DV), f32)          # (64, 32)

    w_pack = jnp.zeros((72, 128), f32)
    w_pack = w_pack.at[0:R, 0:32].set(m_q_rep)
    w_pack = w_pack.at[0:R, 32:64].set(m_k_rep)
    w_pack = w_pack.at[0:R, 64:96].set(blk)
    w_pack = w_pack.at[0:DM, 96:128].set(wv.T)
    w_pack = w_pack.at[DM:2 * DM, 96:128].set(fc_w.T)
    w_pack = w_pack.at[2 * DM, 0:32].set(fc_b)
    w_pack = w_pack.at[2 * DM + 1, 0:32].set(ln_g)
    w_pack = w_pack.at[2 * DM + 2, 0:32].set(ln_b)

    # Activation-slab template holding the constant "ones" blocks.
    a_base = jnp.zeros((R, 128), f32)
    a_base = a_base.at[:, 32:64].set(1.0)        # pass-through for m_k_rep
    a_base = a_base.at[0:DM, 64:80].set(1.0)     # top half of rhs (q-score column)
    return w_pack, a_base


@jax.jit
def map_mha_forward(q, k, v, mask, w_pack, a_base):
    """q/k/v: (B, L, DM) f32; mask: (B, LQ, LK) bool (True = masked out)."""
    f32 = jnp.float32
    q2d = q.reshape(BL, DM).astype(f32)
    k2d = k.reshape(BL, DM).astype(f32)
    v2d = v.reshape(BL, DM).astype(f32)
    q_rep = jnp.broadcast_to(q.astype(f32)[:, None, :, :],
                             (B, H, LQ, DM)).reshape(R, DM)

    # Additive mask bias in the (b,h,i) x (b',j) layout: -1e10 for masked or
    # cross-batch entries (those entries softmax to exactly 0 inside the kernel).
    batch_neq = jnp.arange(B)[:, None] != jnp.arange(B)[None, :]                 # (B,B)
    bias_bool = mask[:, None, :, None, :] | batch_neq[:, None, None, :, None]    # (B,1,LQ,B,LK)
    bias = jnp.where(jnp.broadcast_to(bias_bool, (B, H, LQ, B, LK)), NEG, 0.0)
    bias = bias.astype(f32).reshape(R, BL)

    a_pack = a_base.at[:, 0:32].set(q_rep)
    a_pack = a_pack.at[DM:2 * DM, 64:80].set(k2d.T)
    a_pack = a_pack.at[:, 80:96].set(bias)
    a_pack = a_pack.at[0:BL, 96:128].set(v2d)
    a_pack = a_pack.at[BL:2 * BL, 96:128].set(q2d)

    slab = pl.pallas_call(
        map_mha_kernel,
        out_shape=jax.ShapeDtypeStruct((BL, 128), f32),
        cost_estimate=pl.CostEstimate(flops=300_000, transcendentals=1100,
                                      bytes_accessed=80_000),
    )(a_pack, w_pack)

    out = slab[:, 0:32].reshape(B, LQ, DM)
    p_wide = jnp.concatenate(
        [slab[:, 32:48], slab[:, 48:64], slab[:, 64:80], slab[:, 80:96]], axis=0)  # (64,16)
    p5 = p_wide.reshape(B, H, LQ, B, LK)
    attn = p5[jnp.arange(B), :, :, jnp.arange(B), :]          # (B,H,LQ,LK) batch diagonal
    attn = attn.transpose(1, 0, 2, 3).reshape(H * B, LQ, LK)  # (n_head*sz_b, LQ, LK)
    return out, attn


# ---------------- plain-JAX reference (mirrors the PyTorch forward) ----------
def reference_forward(q, k, v, mask, params):
    qp = q @ params["wq"].T
    kp = k @ params["wk"].T
    vp = v @ params["wv"].T
    qh = qp.reshape(B, LQ, H, DK).transpose(2, 0, 1, 3).reshape(H * B, LQ, DK)
    kh = kp.reshape(B, LK, H, DK).transpose(2, 0, 1, 3).reshape(H * B, LK, DK)
    vh = vp.reshape(B, LK, H, DV).transpose(2, 0, 1, 3).reshape(H * B, LK, DV)
    qe = jnp.broadcast_to(qh[:, :, None, :], (H * B, LQ, LK, DK))
    ke = jnp.broadcast_to(kh[:, None, :, :], (H * B, LQ, LK, DK))
    qk = jnp.concatenate([qe, ke], axis=3)
    attn = jnp.squeeze(qk @ params["w_map"].T, axis=-1)          # (H*B, LQ, LK)
    maskr = jnp.tile(mask, (H, 1, 1))
    attn = jnp.where(maskr, NEG, attn)
    attn = jax.nn.softmax(attn, axis=2)
    out = jnp.einsum("nij,njd->nid", attn, vh)                   # (H*B, LQ, DV)
    out = out.reshape(H, B, LQ, DV).transpose(1, 2, 0, 3).reshape(B, LQ, H * DV)
    out = out @ params["fc_w"].T + params["fc_b"]
    out = jnp.where(out > 0.0, out, SLOPE * out)                 # LeakyReLU(0.2)
    out = out + q                                                # residual
    mu = jnp.mean(out, axis=-1, keepdims=True)
    var = jnp.mean((out - mu) ** 2, axis=-1, keepdims=True)
    out = (out - mu) / jnp.sqrt(var + EPS) * params["ln_g"] + params["ln_b"]
    return out, attn


def make_params(key):
    ks = jax.random.split(key, 6)
    s = 0.2
    return {
        "wq": jax.random.normal(ks[0], (H * DK, DM), jnp.float32) * s,
        "wk": jax.random.normal(ks[1], (H * DK, DM), jnp.float32) * s,
        "wv": jax.random.normal(ks[2], (H * DK, DM), jnp.float32) * s,
        "w_map": jax.random.normal(ks[3], (1, 2 * DK), jnp.float32) * s,
        "fc_w": jax.random.normal(ks[4], (DM, H * DV), jnp.float32) * s,
        "fc_b": jax.random.normal(ks[5], (DM,), jnp.float32) * 0.05,
        "ln_g": jnp.ones((DM,), jnp.float32),
        "ln_b": jnp.zeros((DM,), jnp.float32),
    }


if __name__ == "__main__":
    root = jax.random.PRNGKey(0)
    kq, kk, kv, kp, km = jax.random.split(root, 5)
    q = jax.random.normal(kq, (B, LQ, DM), jnp.float32)
    k = jax.random.normal(kk, (B, LK, DM), jnp.float32)
    v = jax.random.normal(kv, (B, LK, DM), jnp.float32)
    params = make_params(kp)

    # key-padding style boolean mask (True = masked out), never fully masks a row
    key_valid = jax.random.uniform(km, (B, 1, LK)) < 0.7
    key_valid = key_valid.at[:, :, 0].set(True)
    mask = jnp.broadcast_to(~key_valid, (B, LQ, LK))

    # parameter packing runs once, outside the per-call jit path
    w_pack, a_base = pack_params(params)

    out, attn = map_mha_forward(q, k, v, mask, w_pack, a_base)
    out, attn = jax.block_until_ready((out, attn))

    ref_out, ref_attn = reference_forward(q, k, v, mask, params)
    np.testing.assert_allclose(np.asarray(out), np.asarray(ref_out),
                               rtol=2e-3, atol=2e-3)
    np.testing.assert_allclose(np.asarray(attn), np.asarray(ref_attn),
                               rtol=2e-3, atol=2e-3)
    print("KERNEL_OK")
</pallas_src>

<mosaic_0001>
module attributes {stable_mosaic.version = 11 : i64} {
  func.func @map_mha_kernel(%arg0: memref<64x128xf32, #tpu.memory_space<vmem>>, %arg1: memref<72x128xf32, #tpu.memory_space<vmem>>, %arg2: memref<16x128xf32, #tpu.memory_space<vmem>>) attributes {dimension_semantics = [], scalar_prefetch = 0 : i64, scratch_operands = 0 : i64, tpu.core_type = #tpu.core_type<tc>} {
    %c0 = arith.constant 0 : index
    %c0_0 = arith.constant 0 : index
    %0 = vector.load %arg1[%c0, %c0_0] : memref<72x128xf32, #tpu.memory_space<vmem>>, vector<64x64xf32>
    %c0_1 = arith.constant 0 : index
    %c64 = arith.constant 64 : index
    %1 = vector.load %arg1[%c0_1, %c64] : memref<72x128xf32, #tpu.memory_space<vmem>>, vector<64x32xf32>
    %c0_2 = arith.constant 0 : index
    %c96 = arith.constant 96 : index
    %2 = vector.load %arg1[%c0_2, %c96] : memref<72x128xf32, #tpu.memory_space<vmem>>, vector<32x32xf32>
    %c32 = arith.constant 32 : index
    %c96_3 = arith.constant 96 : index
    %3 = vector.load %arg1[%c32, %c96_3] : memref<72x128xf32, #tpu.memory_space<vmem>>, vector<32x32xf32>
    %c64_4 = arith.constant 64 : index
    %c0_5 = arith.constant 0 : index
    %4 = vector.load %arg1[%c64_4, %c0_5] : memref<72x128xf32, #tpu.memory_space<vmem>>, vector<1x32xf32>
    %c65 = arith.constant 65 : index
    %c0_6 = arith.constant 0 : index
    %5 = vector.load %arg1[%c65, %c0_6] : memref<72x128xf32, #tpu.memory_space<vmem>>, vector<1x32xf32>
    %c66 = arith.constant 66 : index
    %c0_7 = arith.constant 0 : index
    %6 = vector.load %arg1[%c66, %c0_7] : memref<72x128xf32, #tpu.memory_space<vmem>>, vector<1x32xf32>
    %c0_8 = arith.constant 0 : index
    %c0_9 = arith.constant 0 : index
    %7 = vector.load %arg0[%c0_8, %c0_9] : memref<64x128xf32, #tpu.memory_space<vmem>>, vector<64x64xf32>
    %c0_10 = arith.constant 0 : index
    %c64_11 = arith.constant 64 : index
    %8 = vector.load %arg0[%c0_10, %c64_11] : memref<64x128xf32, #tpu.memory_space<vmem>>, vector<64x16xf32>
    %c0_12 = arith.constant 0 : index
    %c80 = arith.constant 80 : index
    %9 = vector.load %arg0[%c0_12, %c80] : memref<64x128xf32, #tpu.memory_space<vmem>>, vector<64x16xf32>
    %c0_13 = arith.constant 0 : index
    %c96_14 = arith.constant 96 : index
    %10 = vector.load %arg0[%c0_13, %c96_14] : memref<64x128xf32, #tpu.memory_space<vmem>>, vector<16x32xf32>
    %c16 = arith.constant 16 : index
    %c96_15 = arith.constant 96 : index
    %11 = vector.load %arg0[%c16, %c96_15] : memref<64x128xf32, #tpu.memory_space<vmem>>, vector<16x32xf32>
    %cst = arith.constant dense<0.000000e+00> : vector<16x32xf32>
    %12 = tpu.matmul %10, %2, %cst {dimension_numbers = #tpu.dot_dimension_numbers<[1], [0], [0], [1], [0, 0, 1, 1], [], []>} : vector<16x32xf32>, vector<32x32xf32>, vector<16x32xf32> -> vector<16x32xf32>
    %13 = arith.mulf %0, %7 : vector<64x64xf32>
    %cst_16 = arith.constant dense<0.000000e+00> : vector<64x16xf32>
    %14 = tpu.matmul %13, %8, %cst_16 {dimension_numbers = #tpu.dot_dimension_numbers<[1], [0], [0], [1], [0, 0, 1, 1], [], []>} : vector<64x64xf32>, vector<64x16xf32>, vector<64x16xf32> -> vector<64x16xf32>
    %15 = arith.addf %14, %9 : vector<64x16xf32>
    %cst_17 = arith.constant dense<0xFF800000> : vector<64xf32>
    %16 = vector.multi_reduction <maximumf>, %15, %cst_17 [1] : vector<64x16xf32> to vector<64xf32>
    %17 = vector.shape_cast %16 : vector<64xf32> to vector<64x1xf32>
    %18 = vector.broadcast %17 : vector<64x1xf32> to vector<64x16xf32>
    %19 = arith.subf %15, %18 : vector<64x16xf32>
    %20 = math.exp %19 : vector<64x16xf32>
    %cst_18 = arith.constant dense<0.000000e+00> : vector<64xf32>
    %21 = vector.multi_reduction <add>, %20, %cst_18 [1] : vector<64x16xf32> to vector<64xf32>
    %22 = vector.shape_cast %21 : vector<64xf32> to vector<64x1xf32>
    %23 = vector.broadcast %22 : vector<64x1xf32> to vector<64x16xf32>
    %24 = arith.divf %20, %23 : vector<64x16xf32>
    %cst_19 = arith.constant dense<0.000000e+00> : vector<64x32xf32>
    %25 = tpu.matmul %24, %12, %cst_19 {dimension_numbers = #tpu.dot_dimension_numbers<[1], [0], [0], [1], [0, 0, 1, 1], [], []>} : vector<64x16xf32>, vector<16x32xf32>, vector<64x32xf32> -> vector<64x32xf32>
    %26 = arith.mulf %25, %1 : vector<64x32xf32>
    %27 = vector.extract_strided_slice %26 {offsets = [0, 0], sizes = [8, 32], strides = [1, 1]} : vector<64x32xf32> to vector<8x32xf32>
    %28 = vector.extract_strided_slice %26 {offsets = [8, 0], sizes = [8, 32], strides = [1, 1]} : vector<64x32xf32> to vector<8x32xf32>
    %29 = arith.addf %27, %28 : vector<8x32xf32>
    %30 = vector.extract_strided_slice %26 {offsets = [16, 0], sizes = [8, 32], strides = [1, 1]} : vector<64x32xf32> to vector<8x32xf32>
    %31 = arith.addf %29, %30 : vector<8x32xf32>
    %32 = vector.extract_strided_slice %26 {offsets = [24, 0], sizes = [8, 32], strides = [1, 1]} : vector<64x32xf32> to vector<8x32xf32>
    %33 = arith.addf %31, %32 : vector<8x32xf32>
    %34 = vector.extract_strided_slice %26 {offsets = [32, 0], sizes = [8, 32], strides = [1, 1]} : vector<64x32xf32> to vector<8x32xf32>
    %35 = vector.extract_strided_slice %26 {offsets = [40, 0], sizes = [8, 32], strides = [1, 1]} : vector<64x32xf32> to vector<8x32xf32>
    %36 = arith.addf %34, %35 : vector<8x32xf32>
    %37 = vector.extract_strided_slice %26 {offsets = [48, 0], sizes = [8, 32], strides = [1, 1]} : vector<64x32xf32> to vector<8x32xf32>
    %38 = arith.addf %36, %37 : vector<8x32xf32>
    %39 = vector.extract_strided_slice %26 {offsets = [56, 0], sizes = [8, 32], strides = [1, 1]} : vector<64x32xf32> to vector<8x32xf32>
    %40 = arith.addf %38, %39 : vector<8x32xf32>
    %41 = tpu.concatenate %33, %40 in 0 : vector<8x32xf32>, vector<8x32xf32> -> vector<16x32xf32>
    %cst_20 = arith.constant dense<0.000000e+00> : vector<16x32xf32>
    %42 = tpu.matmul %41, %3, %cst_20 {dimension_numbers = #tpu.dot_dimension_numbers<[1], [0], [0], [1], [0, 0, 1, 1], [], []>} : vector<16x32xf32>, vector<32x32xf32>, vector<16x32xf32> -> vector<16x32xf32>
    %43 = vector.broadcast %4 : vector<1x32xf32> to vector<16x32xf32>
    %44 = arith.addf %42, %43 : vector<16x32xf32>
    %cst_21 = arith.constant 0.000000e+00 : f32
    %45 = vector.broadcast %cst_21 : f32 to vector<16x32xf32>
    %46 = arith.cmpf ogt, %44, %45 : vector<16x32xf32>
    %cst_22 = arith.constant 2.000000e-01 : f32
    %47 = vector.broadcast %cst_22 : f32 to vector<16x32xf32>
    %48 = arith.mulf %47, %44 : vector<16x32xf32>
    %49 = arith.select %46, %44, %48 : vector<16x32xi1>, vector<16x32xf32>
    %50 = arith.addf %49, %11 : vector<16x32xf32>
    %cst_23 = arith.constant dense<0.000000e+00> : vector<16xf32>
    %51 = vector.multi_reduction <add>, %50, %cst_23 [1] : vector<16x32xf32> to vector<16xf32>
    %52 = vector.shape_cast %51 : vector<16xf32> to vector<16x1xf32>
    %cst_24 = arith.constant 3.200000e+01 : f32
    %53 = vector.broadcast %cst_24 : f32 to vector<16x1xf32>
    %54 = arith.divf %52, %53 : vector<16x1xf32>
    %55 = vector.broadcast %54 : vector<16x1xf32> to vector<16x32xf32>
    %56 = arith.subf %50, %55 : vector<16x32xf32>
    %57 = vector.broadcast %54 : vector<16x1xf32> to vector<16x32xf32>
    %58 = arith.subf %50, %57 : vector<16x32xf32>
    %59 = arith.mulf %56, %58 : vector<16x32xf32>
    %cst_25 = arith.constant dense<0.000000e+00> : vector<16xf32>
    %60 = vector.multi_reduction <add>, %59, %cst_25 [1] : vector<16x32xf32> to vector<16xf32>
    %61 = vector.shape_cast %60 : vector<16xf32> to vector<16x1xf32>
    %cst_26 = arith.constant 3.200000e+01 : f32
    %62 = vector.broadcast %cst_26 : f32 to vector<16x1xf32>
    %63 = arith.divf %61, %62 : vector<16x1xf32>
    %64 = vector.broadcast %54 : vector<16x1xf32> to vector<16x32xf32>
    %65 = arith.subf %50, %64 : vector<16x32xf32>
    %cst_27 = arith.constant 9.99999974E-6 : f32
    %66 = vector.broadcast %cst_27 : f32 to vector<16x1xf32>
    %67 = arith.addf %63, %66 : vector<16x1xf32>
    %68 = math.rsqrt %67 : vector<16x1xf32>
    %69 = vector.broadcast %68 : vector<16x1xf32> to vector<16x32xf32>
    %70 = arith.mulf %65, %69 : vector<16x32xf32>
    %71 = vector.broadcast %5 : vector<1x32xf32> to vector<16x32xf32>
    %72 = arith.mulf %70, %71 : vector<16x32xf32>
    %73 = vector.broadcast %6 : vector<1x32xf32> to vector<16x32xf32>
    %74 = arith.addf %72, %73 : vector<16x32xf32>
    %c0_28 = arith.constant 0 : index
    %c0_29 = arith.constant 0 : index
    %75 = vector.load %arg2[%c0_28, %c0_29] : memref<16x128xf32, #tpu.memory_space<vmem>>, vector<16x32xf32>
    tpu.vector_store %arg2[%c0_28, %c0_29], %74 {strides = array<i32>} : memref<16x128xf32, #tpu.memory_space<vmem>>, vector<16x32xf32>,
    %76 = vector.extract_strided_slice %24 {offsets = [0, 0], sizes = [16, 16], strides = [1, 1]} : vector<64x16xf32> to vector<16x16xf32>
    %c0_30 = arith.constant 0 : index
    %c32_31 = arith.constant 32 : index
    %77 = vector.load %arg2[%c0_30, %c32_31] : memref<16x128xf32, #tpu.memory_space<vmem>>, vector<16x16xf32>
    tpu.vector_store %arg2[%c0_30, %c32_31], %76 {strides = array<i32>} : memref<16x128xf32, #tpu.memory_space<vmem>>, vector<16x16xf32>,
    %78 = vector.extract_strided_slice %24 {offsets = [16, 0], sizes = [16, 16], strides = [1, 1]} : vector<64x16xf32> to vector<16x16xf32>
    %c0_32 = arith.constant 0 : index
    %c48 = arith.constant 48 : index
    %79 = vector.load %arg2[%c0_32, %c48] : memref<16x128xf32, #tpu.memory_space<vmem>>, vector<16x16xf32>
    tpu.vector_store %arg2[%c0_32, %c48], %78 {strides = array<i32>} : memref<16x128xf32, #tpu.memory_space<vmem>>, vector<16x16xf32>,
    %80 = vector.extract_strided_slice %24 {offsets = [32, 0], sizes = [16, 16], strides = [1, 1]} : vector<64x16xf32> to vector<16x16xf32>
    %c0_33 = arith.constant 0 : index
    %c64_34 = arith.constant 64 : index
    %81 = vector.load %arg2[%c0_33, %c64_34] : memref<16x128xf32, #tpu.memory_space<vmem>>, vector<16x16xf32>
    tpu.vector_store %arg2[%c0_33, %c64_34], %80 {strides = array<i32>} : memref<16x128xf32, #tpu.memory_space<vmem>>, vector<16x16xf32>,
    %82 = vector.extract_strided_slice %24 {offsets = [48, 0], sizes = [16, 16], strides = [1, 1]} : vector<64x16xf32> to vector<16x16xf32>
    %c0_35 = arith.constant 0 : index
    %c80_36 = arith.constant 80 : index
    %83 = vector.load %arg2[%c0_35, %c80_36] : memref<16x128xf32, #tpu.memory_space<vmem>>, vector<16x16xf32>
    tpu.vector_store %arg2[%c0_35, %c80_36], %82 {strides = array<i32>} : memref<16x128xf32, #tpu.memory_space<vmem>>, vector<16x16xf32>,
    %cst_37 = arith.constant 0.000000e+00 : f32
    %84 = vector.broadcast %cst_37 : f32 to vector<16x32xf32>
    %c0_38 = arith.constant 0 : index
    %c96_39 = arith.constant 96 : index
    %85 = vector.load %arg2[%c0_38, %c96_39] : memref<16x128xf32, #tpu.memory_space<vmem>>, vector<16x32xf32>
    tpu.vector_store %arg2[%c0_38, %c96_39], %84 {strides = array<i32>} : memref<16x128xf32, #tpu.memory_space<vmem>>, vector<16x32xf32>,
    return
  }
}

</mosaic_0001>

<llo_original>
// kernel: map_mha_forward.1
$region0: #{map_mha_forward.1}
  #allocation0 [shape = 'u32[]', space=smem, size = 0x4, offset = 0x4, fixed_abs, tag = 'smem constant byte address 0x4 - core index']
  #allocation1 [shape = 'u32[144,128]{1,0:T(1,128)}', space=vmem, size = 0x12000, scoped, tag = 'internal scratch']
  %s0 = inlined_call_operand.vmem [shape: f32[64,128], index: 0, kind: input, shape index: {}]
  %s1 = inlined_call_operand.vmem [shape: f32[72,128], index: 1, kind: input, shape index: {}]
  %s2 = inlined_call_operand.vmem [shape: f32[16,128], index: 2, kind: output, shape index: {}]
  %s3 = sld [smem:[#allocation0]]
  $region18: #{map_mha_forward.1} parent=0
    _
  %s5 = ssub.s32 1, %s3
  %s6 = scalar_select 0, %s5, %s3
  // Predicated region
  $region2: #{map_mha_forward.1} parent=0 // pred_check
    _
  $region3: #{map_mha_forward.1} parent=0 // pred_check_branch
    %8 = sbr.rel (0) target = $region5
  $region4: #{map_mha_forward.1} parent=0 // pred_region
    _
  $region5: #{map_mha_forward.1} parent=0 // pred_fallthru
    _
  // Predicated region
  $region6: #{map_mha_forward.1} parent=0 // pred_check
    _
  $region7: #{map_mha_forward.1} parent=0 // pred_check_branch
    %10 = sbr.rel (0) target = $region9
  $region8: #{map_mha_forward.1} parent=0 // pred_region
    _
  $region9: #{map_mha_forward.1} parent=0 // pred_fallthru
    _
  %v11 = vld [vmem:[%s1] sm:$0xff]
  %v12 = vld [vmem:[%s1 + $0x8] sm:$0xff]
  %v13 = vld [vmem:[%s1 + $0x10] sm:$0xff]
  %v14 = vld [vmem:[%s1 + $0x18] sm:$0xff]
  %v15 = vld [vmem:[%s1 + $0x20] sm:$0xff]
  %v16 = vld [vmem:[%s1 + $0x28] sm:$0xff]
  %v17 = vld [vmem:[%s1 + $0x30] sm:$0xff]
  %v18 = vld [vmem:[%s1 + $0x38] sm:$0xff]
  %v19 = vld [vmem:[%s1 + $0x40] sm:$0x1]
  %v20 = vld [vmem:[%s1 + $0x41] sm:$0x1]
  %v21 = vld [vmem:[%s1 + $0x42] sm:$0x1]
  %v22 = vld [vmem:[%s0] sm:$0xff]
  %v23 = vld [vmem:[%s0 + $0x8] sm:$0xff]
  %v24 = vld [vmem:[%s0 + $0x10] sm:$0xff]
  %v25 = vld [vmem:[%s0 + $0x18] sm:$0xff]
  %v26 = vld [vmem:[%s0 + $0x20] sm:$0xff]
  %v27 = vld [vmem:[%s0 + $0x28] sm:$0xff]
  %v28 = vld [vmem:[%s0 + $0x30] sm:$0xff]
  %v29 = vld [vmem:[%s0 + $0x38] sm:$0xff]
  %v30 = vld [vmem:[%s0] sm:$0xff]
  %v31 = vld [vmem:[%s0 + $0x8] sm:$0xff]
  %v32 = vld [vmem:[%s0 + $0x10] sm:$0xff]
  %v33 = vld [vmem:[%s0 + $0x18] sm:$0xff]
  %36 = vrot.lane.b32.xlu0 %v30, 32
  %v37 = vpop.permute.xlu0 %36
  %38 = vrot.lane.b32.xlu0 %v31, 32
  %v39 = vpop.permute.xlu0 %38
  %44 = vrot.lane.b32.xlu0 %v11, 32
  %v45 = vpop.permute.xlu0 %44
  %46 = vrot.lane.b32.xlu0 %v12, 32
  %v47 = vpop.permute.xlu0 %46
  %48 = vrot.lane.b32.xlu0 %v13, 32
  %v49 = vpop.permute.xlu0 %48
  %50 = vrot.lane.b32.xlu0 %v14, 32
  %v51 = vpop.permute.xlu0 %50
  %vm56 = vcmask 261120
  %v57 = vsel %vm56, %v37, 0
  %v59 = vsel %vm56, %v39, 0
  %61 = vmatprep.subr.mxu0 0.0
  %62 = vmatpush1.msra.mxu0 %v45
  %63 = vmatprep.subr.mxu0 0.0
  %64 = vmatpush1.msra.mxu0 %v47
  %65 = vmatprep.subr.mxu0 0.0
  %66 = vmatpush1.msra.mxu0 %v49
  %67 = vmatprep.subr.mxu0 0.0
  %68 = vmatpush1.msra.mxu0 %v51
  %69 = vmatprep.subr.mxu0 0.0
  %70 = vmatpush1.msra.mxu0 0.0
  %71 = vmatprep.subr.mxu0 0.0
  %72 = vmatpush1.msra.mxu0 0.0
  %73 = vmatprep.subr.mxu0 0.0
  %74 = vmatpush1.msra.mxu0 0.0
  %75 = vmatprep.subr.mxu0 0.0
  %76 = vmatpush1.msra.mxu0 0.0
  %77 = vmatprep.subr.mxu0 0.0
  %78 = vmatpush1.msra.mxu0 0.0
  %79 = vmatprep.subr.mxu0 0.0
  %80 = vmatpush1.msra.mxu0 0.0
  %81 = vmatprep.subr.mxu0 0.0
  %82 = vmatpush1.msra.mxu0 0.0
  %83 = vmatprep.subr.mxu0 0.0
  %84 = vmatpush1.msra.mxu0 0.0
  %85 = vmatprep.subr.mxu0 0.0
  %86 = vmatpush1.msra.mxu0 0.0
  %87 = vmatprep.subr.mxu0 0.0
  %88 = vmatpush1.msra.mxu0 0.0
  %89 = vmatprep.subr.mxu0 0.0
  %90 = vmatpush1.msra.mxu0 0.0
  %91 = vmatprep.subr.mxu0 0.0
  %92 = vmatpush1.msra.mxu0 0.0
  %93 = vmatprep.subr.mxu0 0.0
  %94 = vmatpush1.msra.mxu0 0.0
  %95 = vmatprep.subr.mxu0 0.0
  %96 = vmatpush1.msra.mxu0 0.0
  %97 = vmatprep.subr.mxu0 0.0
  %98 = vmatpush1.msra.mxu0 0.0
  %99 = vmatprep.subr.mxu0 0.0
  %100 = vmatpush1.msra.mxu0 0.0
  %101 = vmatprep.subr.mxu0 0.0
  %102 = vmatpush1.msra.mxu0 0.0
  %103 = vmatprep.subr.mxu0 0.0
  %104 = vmatpush1.msra.mxu0 0.0
  %105 = vmatprep.subr.mxu0 0.0
  %106 = vmatpush1.msra.mxu0 0.0
  %107 = vmatprep.subr.mxu0 0.0
  %108 = vmatpush1.msra.mxu0 0.0
  %109 = vmatprep.subr.mxu0 0.0
  %110 = vmatpush1.msra.mxu0 0.0
  %111 = vmatprep.subr.mxu0 0.0
  %112 = vmatpush1.msra.mxu0 0.0
  %113 = vmatprep.subr.mxu0 0.0
  %114 = vmatpush1.msra.mxu0 0.0
  %115 = vmatprep.subr.mxu0 0.0
  %116 = vmatpush1.msra.mxu0 0.0
  %117 = vmatprep.subr.mxu0 0.0
  %118 = vmatpush1.msra.mxu0 0.0
  %119 = vmatprep.subr.mxu0 0.0
  %120 = vmatpush1.msra.mxu0 0.0
  %121 = vmatprep.subr.mxu0 0.0
  %122 = vmatpush1.msra.mxu0 0.0
  %123 = vmatprep.subr.mxu0 0.0
  %124 = vmatpush1.msra.mxu0 0.0
  %125 = vmatprep.mubr.f32.mxu0 0.0
  %126 = vmatmul.mubr.f32.gmra.mrb[0].mxu0 %v57
  %v127 = vpop.f32.mrb[0].mxu0
  %v128 = vadd.f32 0.0, %v127
  %v129 = vpop.f32.mrb[0].mxu0
  %130 = vmatprep.mubr.f32.mxu0 0.0
  %131 = vmatmul.mubr.f32.gmra.mrb[0].mxu0 %v59
  %v132 = vpop.f32.mrb[0].mxu0
  %v133 = vadd.f32 0.0, %v132
  %v134 = vpop.f32.mrb[0].mxu0
  %135 = vdwg.mxu0
  %v136 = vmul.f32 %v11, %v22
  %v137 = vmul.f32 %v12, %v23
  %v138 = vmul.f32 %v13, %v24
  %v139 = vmul.f32 %v14, %v25
  %v140 = vmul.f32 %v15, %v26
  %v141 = vmul.f32 %v16, %v27
  %v142 = vmul.f32 %v17, %v28
  %v143 = vmul.f32 %v18, %v29
  %152 = vrot.lane.b32.xlu0 %v22, 64
  %v153 = vpop.permute.xlu0 %152
  %154 = vrot.lane.b32.xlu0 %v23, 64
  %v155 = vpop.permute.xlu0 %154
  %156 = vrot.lane.b32.xlu0 %v24, 64
  %v157 = vpop.permute.xlu0 %156
  %158 = vrot.lane.b32.xlu0 %v25, 64
  %v159 = vpop.permute.xlu0 %158
  %160 = vrot.lane.b32.xlu0 %v26, 64
  %v161 = vpop.permute.xlu0 %160
  %162 = vrot.lane.b32.xlu0 %v27, 64
  %v163 = vpop.permute.xlu0 %162
  %164 = vrot.lane.b32.xlu0 %v28, 64
  %v165 = vpop.permute.xlu0 %164
  %166 = vrot.lane.b32.xlu0 %v29, 64
  %v167 = vpop.permute.xlu0 %166
  %176 = vrot.lane.b32.xlu0 %v22, 48
  %v177 = vpop.permute.xlu0 %176
  %178 = vrot.lane.b32.xlu0 %v23, 48
  %v179 = vpop.permute.xlu0 %178
  %180 = vrot.lane.b32.xlu0 %v24, 48
  %v181 = vpop.permute.xlu0 %180
  %182 = vrot.lane.b32.xlu0 %v25, 48
  %v183 = vpop.permute.xlu0 %182
  %184 = vrot.lane.b32.xlu0 %v26, 48
  %v185 = vpop.permute.xlu0 %184
  %186 = vrot.lane.b32.xlu0 %v27, 48
  %v187 = vpop.permute.xlu0 %186
  %188 = vrot.lane.b32.xlu0 %v28, 48
  %v189 = vpop.permute.xlu0 %188
  %190 = vrot.lane.b32.xlu0 %v29, 48
  %v191 = vpop.permute.xlu0 %190
  %vm200 = vcmask 523264
  %v202 = vsel %vm200, %v136, 0
  %v205 = vsel %vm200, %v137, 0
  %v208 = vsel %vm200, %v138, 0
  %v211 = vsel %vm200, %v139, 0
  %v214 = vsel %vm200, %v140, 0
  %v217 = vsel %vm200, %v141, 0
  %v220 = vsel %vm200, %v142, 0
  %v223 = vsel %vm200, %v143, 0
  %225 = vmatprep.subr.mxu0 0.0
  %226 = vmatpush1.msra.mxu0 %v153
  %227 = vmatprep.subr.mxu0 0.0
  %228 = vmatpush1.msra.mxu0 %v155
  %229 = vmatprep.subr.mxu0 0.0
  %230 = vmatpush1.msra.mxu0 %v157
  %231 = vmatprep.subr.mxu0 0.0
  %232 = vmatpush1.msra.mxu0 %v159
  %233 = vmatprep.subr.mxu0 0.0
  %234 = vmatpush1.msra.mxu0 %v161
  %235 = vmatprep.subr.mxu0 0.0
  %236 = vmatpush1.msra.mxu0 %v163
  %237 = vmatprep.subr.mxu0 0.0
  %238 = vmatpush1.msra.mxu0 %v165
  %239 = vmatprep.subr.mxu0 0.0
  %240 = vmatpush1.msra.mxu0 %v167
  %241 = vmatprep.subr.mxu0 0.0
  %242 = vmatpush1.msra.mxu0 0.0
  %243 = vmatprep.subr.mxu0 0.0
  %244 = vmatpush1.msra.mxu0 0.0
  %245 = vmatprep.subr.mxu0 0.0
  %246 = vmatpush1.msra.mxu0 0.0
  %247 = vmatprep.subr.mxu0 0.0
  %248 = vmatpush1.msra.mxu0 0.0
  %249 = vmatprep.subr.mxu0 0.0
  %250 = vmatpush1.msra.mxu0 0.0
  %251 = vmatprep.subr.mxu0 0.0
  %252 = vmatpush1.msra.mxu0 0.0
  %253 = vmatprep.subr.mxu0 0.0
  %254 = vmatpush1.msra.mxu0 0.0
  %255 = vmatprep.subr.mxu0 0.0
  %256 = vmatpush1.msra.mxu0 0.0
  %257 = vmatprep.subr.mxu0 0.0
  %258 = vmatpush1.msra.mxu0 0.0
  %259 = vmatprep.subr.mxu0 0.0
  %260 = vmatpush1.msra.mxu0 0.0
  %261 = vmatprep.subr.mxu0 0.0
  %262 = vmatpush1.msra.mxu0 0.0
  %263 = vmatprep.subr.mxu0 0.0
  %264 = vmatpush1.msra.mxu0 0.0
  %265 = vmatprep.subr.mxu0 0.0
  %266 = vmatpush1.msra.mxu0 0.0
  %267 = vmatprep.subr.mxu0 0.0
  %268 = vmatpush1.msra.mxu0 0.0
  %269 = vmatprep.subr.mxu0 0.0
  %270 = vmatpush1.msra.mxu0 0.0
  %271 = vmatprep.subr.mxu0 0.0
  %272 = vmatpush1.msra.mxu0 0.0
  %273 = vmatprep.subr.mxu0 0.0
  %274 = vmatpush1.msra.mxu0 0.0
  %275 = vmatprep.subr.mxu0 0.0
  %276 = vmatpush1.msra.mxu0 0.0
  %277 = vmatprep.subr.mxu0 0.0
  %278 = vmatpush1.msra.mxu0 0.0
  %279 = vmatprep.subr.mxu0 0.0
  %280 = vmatpush1.msra.mxu0 0.0
  %281 = vmatprep.subr.mxu0 0.0
  %282 = vmatpush1.msra.mxu0 0.0
  %283 = vmatprep.subr.mxu0 0.0
  %284 = vmatpush1.msra.mxu0 0.0
  %285 = vmatprep.subr.mxu0 0.0
  %286 = vmatpush1.msra.mxu0 0.0
  %287 = vmatprep.subr.mxu0 0.0
  %288 = vmatpush1.msra.mxu0 0.0
  %289 = vmatprep.mubr.f32.mxu0 0.0
  %290 = vmatmul.mubr.f32.gmra.mrb[0].mxu0 %v202
  %v291 = vpop.f32.mrb[0].mxu0
  %v292 = vadd.f32 %v177, %v291
  %v293 = vpop.f32.mrb[0].mxu0
  %294 = vmatprep.mubr.f32.mxu0 0.0
  %295 = vmatmul.mubr.f32.gmra.mrb[0].mxu0 %v205
  %v296 = vpop.f32.mrb[0].mxu0
  %v297 = vadd.f32 %v179, %v296
  %v298 = vpop.f32.mrb[0].mxu0
  %299 = vmatprep.mubr.f32.mxu0 0.0
  %300 = vmatmul.mubr.f32.gmra.mrb[0].mxu0 %v208
  %v301 = vpop.f32.mrb[0].mxu0
  %v302 = vadd.f32 %v181, %v301
  %v303 = vpop.f32.mrb[0].mxu0
  %304 = vmatprep.mubr.f32.mxu0 0.0
  %305 = vmatmul.mubr.f32.gmra.mrb[0].mxu0 %v211
  %v306 = vpop.f32.mrb[0].mxu0
  %v307 = vadd.f32 %v183, %v306
  %v308 = vpop.f32.mrb[0].mxu0
  %309 = vmatprep.mubr.f32.mxu0 0.0
  %310 = vmatmul.mubr.f32.gmra.mrb[0].mxu0 %v214
  %v311 = vpop.f32.mrb[0].mxu0
  %v312 = vadd.f32 %v185, %v311
  %v313 = vpop.f32.mrb[0].mxu0
  %314 = vmatprep.mubr.f32.mxu0 0.0
  %315 = vmatmul.mubr.f32.gmra.mrb[0].mxu0 %v217
  %v316 = vpop.f32.mrb[0].mxu0
  %v317 = vadd.f32 %v187, %v316
  %v318 = vpop.f32.mrb[0].mxu0
  %319 = vmatprep.mubr.f32.mxu0 0.0
  %320 = vmatmul.mubr.f32.gmra.mrb[0].mxu0 %v220
  %v321 = vpop.f32.mrb[0].mxu0
  %v322 = vadd.f32 %v189, %v321
  %v323 = vpop.f32.mrb[0].mxu0
  %324 = vmatprep.mubr.f32.mxu0 0.0
  %325 = vmatmul.mubr.f32.gmra.mrb[0].mxu0 %v223
  %v326 = vpop.f32.mrb[0].mxu0
  %v327 = vadd.f32 %v191, %v326
  %v328 = vpop.f32.mrb[0].mxu0
  %329 = vdwg.mxu0
  %vm330 = vcmask 130048
  %v331 = vsel %vm330, %v292, -inf
  %332 = vmax.xlane.f32.xlu0 %v331
  %v333 = vpop.xlane.xlu0 %332
  %v334 = vsel %vm330, %v297, -inf
  %335 = vmax.xlane.f32.xlu0 %v334
  %v336 = vpop.xlane.xlu0 %335
  %v337 = vsel %vm330, %v302, -inf
  %338 = vmax.xlane.f32.xlu0 %v337
  %v339 = vpop.xlane.xlu0 %338
  %v340 = vsel %vm330, %v307, -inf
  %341 = vmax.xlane.f32.xlu0 %v340
  %v342 = vpop.xlane.xlu0 %341
  %v343 = vsel %vm330, %v312, -inf
  %344 = vmax.xlane.f32.xlu0 %v343
  %v345 = vpop.xlane.xlu0 %344
  %v346 = vsel %vm330, %v317, -inf
  %347 = vmax.xlane.f32.xlu0 %v346
  %v348 = vpop.xlane.xlu0 %347
  %v349 = vsel %vm330, %v322, -inf
  %350 = vmax.xlane.f32.xlu0 %v349
  %v351 = vpop.xlane.xlu0 %350
  %v352 = vsel %vm330, %v327, -inf
  %353 = vmax.xlane.f32.xlu0 %v352
  %v354 = vpop.xlane.xlu0 %353
  %v355 = vsub.f32 %v292, %v333
  %v356 = vsub.f32 %v297, %v336
  %v357 = vsub.f32 %v302, %v339
  %v358 = vsub.f32 %v307, %v342
  %v359 = vsub.f32 %v312, %v345
  %v360 = vsub.f32 %v317, %v348
  %v361 = vsub.f32 %v322, %v351
  %v362 = vsub.f32 %v327, %v354
  %v363 = vmul.f32 %v355, 1.442695
  %v364 = vpow.pop %v363
  %v365 = vmul.f32 %v356, 1.442695
  %v366 = vpow.pop %v365
  %v367 = vmul.f32 %v357, 1.442695
  %v368 = vpow.pop %v367
  %v369 = vmul.f32 %v358, 1.442695
  %v370 = vpow.pop %v369
  %v371 = vmul.f32 %v359, 1.442695
  %v372 = vpow.pop %v371
  %v373 = vmul.f32 %v360, 1.442695
  %v374 = vpow.pop %v373
  %v375 = vmul.f32 %v361, 1.442695
  %v376 = vpow.pop %v375
  %v377 = vmul.f32 %v362, 1.442695
  %v378 = vpow.pop %v377
  %v379 = vsel %vm330, %v364, 0.0
  %380 = vadd.xlane.f32.xlu0 %v379
  %v381 = vpop.xlane.xlu0 %380
  %v382 = vsel %vm330, %v366, 0.0
  %383 = vadd.xlane.f32.xlu0 %v382
  %v384 = vpop.xlane.xlu0 %383
  %v385 = vsel %vm330, %v368, 0.0
  %386 = vadd.xlane.f32.xlu0 %v385
  %v387 = vpop.xlane.xlu0 %386
  %v388 = vsel %vm330, %v370, 0.0
  %389 = vadd.xlane.f32.xlu0 %v388
  %v390 = vpop.xlane.xlu0 %389
  %v391 = vsel %vm330, %v372, 0.0
  %392 = vadd.xlane.f32.xlu0 %v391
  %v393 = vpop.xlane.xlu0 %392
  %v394 = vsel %vm330, %v374, 0.0
  %395 = vadd.xlane.f32.xlu0 %v394
  %v396 = vpop.xlane.xlu0 %395
  %v397 = vsel %vm330, %v376, 0.0
  %398 = vadd.xlane.f32.xlu0 %v397
  %v399 = vpop.xlane.xlu0 %398
  %v400 = vsel %vm330, %v378, 0.0
  %401 = vadd.xlane.f32.xlu0 %v400
  %v402 = vpop.xlane.xlu0 %401
  %v403 = vrcp.pop %v381
  %v404 = vmul.f32 %v364, %v403
  %v405 = vrcp.pop %v384
  %v406 = vmul.f32 %v366, %v405
  %v407 = vrcp.pop %v387
  %v408 = vmul.f32 %v368, %v407
  %v409 = vrcp.pop %v390
  %v410 = vmul.f32 %v370, %v409
  %v411 = vrcp.pop %v393
  %v412 = vmul.f32 %v372, %v411
  %v413 = vrcp.pop %v396
  %v414 = vmul.f32 %v374, %v413
  %v415 = vrcp.pop %v399
  %v416 = vmul.f32 %v376, %v415
  %v417 = vrcp.pop %v402
  %v418 = vmul.f32 %v378, %v417
  %v420 = vsel %vm330, %v404, 0
  %v423 = vsel %vm330, %v406, 0
  %v426 = vsel %vm330, %v408, 0
  %v429 = vsel %vm330, %v410, 0
  %v432 = vsel %vm330, %v412, 0
  %v435 = vsel %vm330, %v414, 0
  %v438 = vsel %vm330, %v416, 0
  %v441 = vsel %vm330, %v418, 0
  %443 = vmatprep.subr.mxu0 0.0
  %444 = vmatpush1.msra.mxu0 %v128
  %445 = vmatprep.subr.mxu0 0.0
  %446 = vmatpush1.msra.mxu0 %v133
  %447 = vmatprep.subr.mxu0 0.0
  %448 = vmatpush1.msra.mxu0 0.0
  %449 = vmatprep.subr.mxu0 0.0
  %450 = vmatpush1.msra.mxu0 0.0
  %451 = vmatprep.subr.mxu0 0.0
  %452 = vmatpush1.msra.mxu0 0.0
  %453 = vmatprep.subr.mxu0 0.0
  %454 = vmatpush1.msra.mxu0 0.0
  %455 = vmatprep.subr.mxu0 0.0
  %456 = vmatpush1.msra.mxu0 0.0
  %457 = vmatprep.subr.mxu0 0.0
  %458 = vmatpush1.msra.mxu0 0.0
  %459 = vmatprep.subr.mxu0 0.0
  %460 = vmatpush1.msra.mxu0 0.0
  %461 = vmatprep.subr.mxu0 0.0
  %462 = vmatpush1.msra.mxu0 0.0
  %463 = vmatprep.subr.mxu0 0.0
  %464 = vmatpush1.msra.mxu0 0.0
  %465 = vmatprep.subr.mxu0 0.0
  %466 = vmatpush1.msra.mxu0 0.0
  %467 = vmatprep.subr.mxu0 0.0
  %468 = vmatpush1.msra.mxu0 0.0
  %469 = vmatprep.subr.mxu0 0.0
  %470 = vmatpush1.msra.mxu0 0.0
  %471 = vmatprep.subr.mxu0 0.0
  %472 = vmatpush1.msra.mxu0 0.0
  %473 = vmatprep.subr.mxu0 0.0
  %474 = vmatpush1.msra.mxu0 0.0
  %475 = vmatprep.subr.mxu0 0.0
  %476 = vmatpush1.msra.mxu0 0.0
  %477 = vmatprep.subr.mxu0 0.0
  %478 = vmatpush1.msra.mxu0 0.0
  %479 = vmatprep.subr.mxu0 0.0
  %480 = vmatpush1.msra.mxu0 0.0
  %481 = vmatprep.subr.mxu0 0.0
  %482 = vmatpush1.msra.mxu0 0.0
  %483 = vmatprep.subr.mxu0 0.0
  %484 = vmatpush1.msra.mxu0 0.0
  %485 = vmatprep.subr.mxu0 0.0
  %486 = vmatpush1.msra.mxu0 0.0
  %487 = vmatprep.subr.mxu0 0.0
  %488 = vmatpush1.msra.mxu0 0.0
  %489 = vmatprep.subr.mxu0 0.0
  %490 = vmatpush1.msra.mxu0 0.0
  %491 = vmatprep.subr.mxu0 0.0
  %492 = vmatpush1.msra.mxu0 0.0
  %493 = vmatprep.subr.mxu0 0.0
  %494 = vmatpush1.msra.mxu0 0.0
  %495 = vmatprep.subr.mxu0 0.0
  %496 = vmatpush1.msra.mxu0 0.0
  %497 = vmatprep.subr.mxu0 0.0
  %498 = vmatpush1.msra.mxu0 0.0
  %499 = vmatprep.subr.mxu0 0.0
  %500 = vmatpush1.msra.mxu0 0.0
  %501 = vmatprep.subr.mxu0 0.0
  %502 = vmatpush1.msra.mxu0 0.0
  %503 = vmatprep.subr.mxu0 0.0
  %504 = vmatpush1.msra.mxu0 0.0
  %505 = vmatprep.subr.mxu0 0.0
  %506 = vmatpush1.msra.mxu0 0.0
  %507 = vmatprep.mubr.f32.mxu0 0.0
  %508 = vmatmul.mubr.f32.gmra.mrb[0].mxu0 %v420
  %v509 = vpop.f32.mrb[0].mxu0
  %v510 = vadd.f32 0.0, %v509
  %v511 = vpop.f32.mrb[0].mxu0
  %512 = vmatprep.mubr.f32.mxu0 0.0
  %513 = vmatmul.mubr.f32.gmra.mrb[0].mxu0 %v423
  %v514 = vpop.f32.mrb[0].mxu0
  %v515 = vadd.f32 0.0, %v514
  %v516 = vpop.f32.mrb[0].mxu0
  %517 = vmatprep.mubr.f32.mxu0 0.0
  %518 = vmatmul.mubr.f32.gmra.mrb[0].mxu0 %v426
  %v519 = vpop.f32.mrb[0].mxu0
  %v520 = vadd.f32 0.0, %v519
  %v521 = vpop.f32.mrb[0].mxu0
  %522 = vmatprep.mubr.f32.mxu0 0.0
  %523 = vmatmul.mubr.f32.gmra.mrb[0].mxu0 %v429
  %v524 = vpop.f32.mrb[0].mxu0
  %v525 = vadd.f32 0.0, %v524
  %v526 = vpop.f32.mrb[0].mxu0
  %527 = vmatprep.mubr.f32.mxu0 0.0
  %528 = vmatmul.mubr.f32.gmra.mrb[0].mxu0 %v432
  %v529 = vpop.f32.mrb[0].mxu0
  %v530 = vadd.f32 0.0, %v529
  %v531 = vpop.f32.mrb[0].mxu0
  %532 = vmatprep.mubr.f32.mxu0 0.0
  %533 = vmatmul.mubr.f32.gmra.mrb[0].mxu0 %v435
  %v534 = vpop.f32.mrb[0].mxu0
  %v535 = vadd.f32 0.0, %v534
  %v536 = vpop.f32.mrb[0].mxu0
  %537 = vmatprep.mubr.f32.mxu0 0.0
  %538 = vmatmul.mubr.f32.gmra.mrb[0].mxu0 %v438
  %v539 = vpop.f32.mrb[0].mxu0
  %v540 = vadd.f32 0.0, %v539
  %v541 = vpop.f32.mrb[0].mxu0
  %542 = vmatprep.mubr.f32.mxu0 0.0
  %543 = vmatmul.mubr.f32.gmra.mrb[0].mxu0 %v441
  %v544 = vpop.f32.mrb[0].mxu0
  %v545 = vadd.f32 0.0, %v544
  %v546 = vpop.f32.mrb[0].mxu0
  %547 = vdwg.mxu0
  %552 = vrot.lane.b32.xlu0 %v11, 64
  %v553 = vpop.permute.xlu0 %552
  %554 = vrot.lane.b32.xlu0 %v12, 64
  %v555 = vpop.permute.xlu0 %554
  %556 = vrot.lane.b32.xlu0 %v13, 64
  %v557 = vpop.permute.xlu0 %556
  %558 = vrot.lane.b32.xlu0 %v14, 64
  %v559 = vpop.permute.xlu0 %558
  %560 = vrot.lane.b32.xlu0 %v15, 64
  %v561 = vpop.permute.xlu0 %560
  %562 = vrot.lane.b32.xlu0 %v16, 64
  %v563 = vpop.permute.xlu0 %562
  %564 = vrot.lane.b32.xlu0 %v17, 64
  %v565 = vpop.permute.xlu0 %564
  %566 = vrot.lane.b32.xlu0 %v18, 64
  %v567 = vpop.permute.xlu0 %566
  %v576 = vmul.f32 %v510, %v553
  %v577 = vmul.f32 %v515, %v555
  %v578 = vmul.f32 %v520, %v557
  %v579 = vmul.f32 %v525, %v559
  %v580 = vmul.f32 %v530, %v561
  %v581 = vmul.f32 %v535, %v563
  %v582 = vmul.f32 %v540, %v565
  %v583 = vmul.f32 %v545, %v567
  %v584 = vadd.f32 %v576, %v577
  %v585 = vadd.f32 %v584, %v578
  %v586 = vadd.f32 %v585, %v579
  %v587 = vadd.f32 %v580, %v581
  %v588 = vadd.f32 %v587, %v582
  %v589 = vadd.f32 %v588, %v583
  %v590 = vlaneseq
  %v591 = vshrl.u32 %v590, 7
  %v592 = vsub.s32 0, %v591
  %v593 = vrot.slane %v19, %v592
  %594 = vrot.lane.b32.xlu0 %v15, 32
  %v595 = vpop.permute.xlu0 %594
  %596 = vrot.lane.b32.xlu0 %v16, 32
  %v597 = vpop.permute.xlu0 %596
  %598 = vrot.lane.b32.xlu0 %v17, 32
  %v599 = vpop.permute.xlu0 %598
  %600 = vrot.lane.b32.xlu0 %v18, 32
  %v601 = vpop.permute.xlu0 %600
  %v607 = vsel %vm56, %v586, 0
  %v610 = vsel %vm56, %v589, 0
  %612 = vmatprep.subr.mxu0 0.0
  %613 = vmatpush1.msra.mxu0 %v595
  %614 = vmatprep.subr.mxu0 0.0
  %615 = vmatpush1.msra.mxu0 %v597
  %616 = vmatprep.subr.mxu0 0.0
  %617 = vmatpush1.msra.mxu0 %v599
  %618 = vmatprep.subr.mxu0 0.0
  %619 = vmatpush1.msra.mxu0 %v601
  %620 = vmatprep.subr.mxu0 0.0
  %621 = vmatpush1.msra.mxu0 0.0
  %622 = vmatprep.subr.mxu0 0.0
  %623 = vmatpush1.msra.mxu0 0.0
  %624 = vmatprep.subr.mxu0 0.0
  %625 = vmatpush1.msra.mxu0 0.0
  %626 = vmatprep.subr.mxu0 0.0
  %627 = vmatpush1.msra.mxu0 0.0
  %628 = vmatprep.subr.mxu0 0.0
  %629 = vmatpush1.msra.mxu0 0.0
  %630 = vmatprep.subr.mxu0 0.0
  %631 = vmatpush1.msra.mxu0 0.0
  %632 = vmatprep.subr.mxu0 0.0
  %633 = vmatpush1.msra.mxu0 0.0
  %634 = vmatprep.subr.mxu0 0.0
  %635 = vmatpush1.msra.mxu0 0.0
  %636 = vmatprep.subr.mxu0 0.0
  %637 = vmatpush1.msra.mxu0 0.0
  %638 = vmatprep.subr.mxu0 0.0
  %639 = vmatpush1.msra.mxu0 0.0
  %640 = vmatprep.subr.mxu0 0.0
  %641 = vmatpush1.msra.mxu0 0.0
  %642 = vmatprep.subr.mxu0 0.0
  %643 = vmatpush1.msra.mxu0 0.0
  %644 = vmatprep.subr.mxu0 0.0
  %645 = vmatpush1.msra.mxu0 0.0
  %646 = vmatprep.subr.mxu0 0.0
  %647 = vmatpush1.msra.mxu0 0.0
  %648 = vmatprep.subr.mxu0 0.0
  %649 = vmatpush1.msra.mxu0 0.0
  %650 = vmatprep.subr.mxu0 0.0
  %651 = vmatpush1.msra.mxu0 0.0
  %652 = vmatprep.subr.mxu0 0.0
  %653 = vmatpush1.msra.mxu0 0.0
  %654 = vmatprep.subr.mxu0 0.0
  %655 = vmatpush1.msra.mxu0 0.0
  %656 = vmatprep.subr.mxu0 0.0
  %657 = vmatpush1.msra.mxu0 0.0
  %658 = vmatprep.subr.mxu0 0.0
  %659 = vmatpush1.msra.mxu0 0.0
  %660 = vmatprep.subr.mxu0 0.0
  %661 = vmatpush1.msra.mxu0 0.0
  %662 = vmatprep.subr.mxu0 0.0
  %663 = vmatpush1.msra.mxu0 0.0
  %664 = vmatprep.subr.mxu0 0.0
  %665 = vmatpush1.msra.mxu0 0.0
  %666 = vmatprep.subr.mxu0 0.0
  %667 = vmatpush1.msra.mxu0 0.0
  %668 = vmatprep.subr.mxu0 0.0
  %669 = vmatpush1.msra.mxu0 0.0
  %670 = vmatprep.subr.mxu0 0.0
  %671 = vmatpush1.msra.mxu0 0.0
  %672 = vmatprep.subr.mxu0 0.0
  %673 = vmatpush1.msra.mxu0 0.0
  %674 = vmatprep.subr.mxu0 0.0
  %675 = vmatpush1.msra.mxu0 0.0
  %676 = vmatprep.mubr.f32.mxu0 0.0
  %677 = vmatmul.mubr.f32.gmra.mrb[0].mxu0 %v607
  %v678 = vpop.f32.mrb[0].mxu0
  %v679 = vadd.f32 %v593, %v678
  %v680 = vpop.f32.mrb[0].mxu0
  %681 = vmatprep.mubr.f32.mxu0 0.0
  %682 = vmatmul.mubr.f32.gmra.mrb[0].mxu0 %v610
  %v683 = vpop.f32.mrb[0].mxu0
  %v684 = vadd.f32 %v593, %v683
  %v685 = vpop.f32.mrb[0].mxu0
  %686 = vdwg.mxu0
  %vm687 = vcmp.gt.f32.partialorder %v679, 0.0
  %vm688 = vcmp.gt.f32.partialorder %v684, 0.0
  %v689 = vmul.f32 %v679, 0.2
  %v690 = vmul.f32 %v684, 0.2
  %v691 = vsel %vm687, %v679, %v689
  %v692 = vsel %vm688, %v684, %v690
  %695 = vrot.lane.b32.xlu0 %v32, 32
  %v696 = vpop.permute.xlu0 %695
  %697 = vrot.lane.b32.xlu0 %v33, 32
  %v698 = vpop.permute.xlu0 %697
  %v701 = vadd.f32 %v691, %v696
  %v702 = vadd.f32 %v692, %v698
  %v703 = vsel %vm56, %v701, 0.0
  %704 = vadd.xlane.f32.xlu0 %v703
  %v705 = vpop.xlane.xlu0 %704
  %v706 = vsel %vm56, %v702, 0.0
  %707 = vadd.xlane.f32.xlu0 %v706
  %v708 = vpop.xlane.xlu0 %707
  %v709 = vrcp.pop 32.0
  %v710 = vmul.f32 %v705, %v709
  %v711 = vmul.f32 %v708, %v709
  %v712 = vsub.f32 %v701, %v710
  %v713 = vsub.f32 %v702, %v711
  %v714 = vmul.f32 %v712, %v712
  %v715 = vmul.f32 %v713, %v713
  %v716 = vsel %vm56, %v714, 0.0
  %717 = vadd.xlane.f32.xlu0 %v716
  %v718 = vpop.xlane.xlu0 %717
  %v719 = vsel %vm56, %v715, 0.0
  %720 = vadd.xlane.f32.xlu0 %v719
  %v721 = vpop.xlane.xlu0 %720
  %v722 = vmul.f32 %v718, %v709
  %v723 = vmul.f32 %v721, %v709
  %v724 = vadd.f32 %v722, 1e-05
  %v725 = vadd.f32 %v723, 1e-05
  %v726 = vrsqrt.pop %v724
  %v727 = vrsqrt.pop %v725
  %v728 = vmul.f32 %v712, %v726
  %v729 = vmul.f32 %v713, %v727
  %v730 = vlaneseq
  %v731 = vshrl.u32 %v730, 7
  %v732 = vsub.s32 0, %v731
  %v733 = vrot.slane %v20, %v732
  %v734 = vmul.f32 %v728, %v733
  %v735 = vmul.f32 %v729, %v733
  %v736 = vlaneseq
  %v737 = vshrl.u32 %v736, 7
  %v738 = vsub.s32 0, %v737
  %v739 = vrot.slane %v21, %v738
  %v740 = vadd.f32 %v734, %v739
  %v741 = vadd.f32 %v735, %v739
  %742 = vst.msk [vmem:[%s2] sm:$0xff] %vm56, %v740
  %743 = vst.msk [vmem:[%s2 + $0x8] sm:$0xff] %vm56, %v741
  %744 = vrot.lane.b32.xlu0 %v404, 32
  %v745 = vpop.permute.xlu0 %744
  %746 = vrot.lane.b32.xlu0 %v406, 32
  %v747 = vpop.permute.xlu0 %746
  %vm750 = vcmask 392448
  %751 = vst.msk [vmem:[%s2] sm:$0xff] %vm750, %v745
  %752 = vst.msk [vmem:[%s2 + $0x8] sm:$0xff] %vm750, %v747
  %753 = vrot.lane.b32.xlu0 %v408, 48
  %v754 = vpop.permute.xlu0 %753
  %755 = vrot.lane.b32.xlu0 %v410, 48
  %v756 = vpop.permute.xlu0 %755
  %vm759 = vcmask 523648
  %760 = vst.msk [vmem:[%s2] sm:$0xff] %vm759, %v754
  %761 = vst.msk [vmem:[%s2 + $0x8] sm:$0xff] %vm759, %v756
  %762 = vrot.lane.b32.xlu0 %v412, 64
  %v763 = vpop.permute.xlu0 %762
  %764 = vrot.lane.b32.xlu0 %v414, 64
  %v765 = vpop.permute.xlu0 %764
  %vm768 = vcmask 654848
  %769 = vst.msk [vmem:[%s2] sm:$0xff] %vm768, %v763
  %770 = vst.msk [vmem:[%s2 + $0x8] sm:$0xff] %vm768, %v765
  %771 = vrot.lane.b32.xlu0 %v416, 80
  %v772 = vpop.permute.xlu0 %771
  %773 = vrot.lane.b32.xlu0 %v418, 80
  %v774 = vpop.permute.xlu0 %773
  %vm777 = vcmask 786048
  %778 = vst.msk [vmem:[%s2] sm:$0xff] %vm777, %v772
  %779 = vst.msk [vmem:[%s2 + $0x8] sm:$0xff] %vm777, %v774
  %vm780 = vcmask 1048320
  %781 = vst.msk [vmem:[%s2] sm:$0xff] %vm780, 0.0
  %782 = vst.msk [vmem:[%s2 + $0x8] sm:$0xff] %vm780, 0.0
  // Predicated region
  $region10: #{map_mha_forward.1} parent=0 // pred_check
    _
  $region11: #{map_mha_forward.1} parent=0 // pred_check_branch
    %784 = sbr.rel (0) target = $region13
  $region12: #{map_mha_forward.1} parent=0 // pred_region
    _
  $region13: #{map_mha_forward.1} parent=0 // pred_fallthru
    _
  // Predicated region
  $region14: #{map_mha_forward.1} parent=0 // pred_check
    _
  $region15: #{map_mha_forward.1} parent=0 // pred_check_branch
    %786 = sbr.rel (0) target = $region17
  $region16: #{map_mha_forward.1} parent=0 // pred_region
    _
  $region17: #{map_mha_forward.1} parent=0 // pred_fallthru
    _

</llo_original>
